<compile_context>
chip_gen: v6e
topology: v6e:2x2x1
jax: 0.10.0
libtpu: 0.0.40
codegen_flags: <defaults>
</compile_context>

<pallas_src>
import jax
import jax.numpy as jnp
from jax.experimental import pallas as pl
from jax.experimental.pallas import tpu as pltpu


def _round_up(x, m):
    return ((x + m - 1) // m) * m


def _round_down(x, m):
    return (x // m) * m


def _vmem_budget_bytes():
    # Per-generation scoped-VMEM limit: v5e/v6e have 128 MiB physical,
    # v7x only 64 MiB per TensorCore -- derive from the hardware, with a
    # conservative (v7x-sized) fallback.
    try:
        cap = int(pltpu.get_tpu_info().vmem_capacity_bytes)
    except Exception:
        cap = 64 * 1024 * 1024
    return min(int(cap * 0.85), 112 * 1024 * 1024)


# ---------------------------------------------------------------------------
# Kernels
# ---------------------------------------------------------------------------

def _dnorm2_kernel(x_ref, y_ref, xx_ref, yy_ref, out_ref):
    # One (TM, TN) tile of  dnorm2 = -2 X Y^T + diag(XX)[:,None] + diag(YY)[None,:]
    xy = jax.lax.dot_general(
        x_ref[...], y_ref[...], (((1,), (1,)), ((), ())),
        preferred_element_type=jnp.float32)                      # MXU, (TM, TN)
    out_ref[...] = -2.0 * xy + xx_ref[...] + yy_ref[...]


def _rbf_fused_kernel(gamma_ref, x_ref, y_ref, xx_ref, yy_ref, out_ref):
    # Fused distance + exp: matmul-bound pass, exp rides the (idle) EUP slot.
    gamma = gamma_ref[0]
    xy = jax.lax.dot_general(
        x_ref[...], y_ref[...], (((1,), (1,)), ((), ())),
        preferred_element_type=jnp.float32)
    d = -2.0 * xy + xx_ref[...] + yy_ref[...]
    out_ref[...] = jnp.exp(-gamma * d)


def _exp_kernel(gamma_ref, d_ref, out_ref):
    out_ref[...] = jnp.exp(-gamma_ref[0] * d_ref[...])


# ---------------------------------------------------------------------------
# Tile sizing (D-aware VMEM budget, asymmetric TM >> TN)
# ---------------------------------------------------------------------------

def _matmul_tiles(N, M, D_pad, in_bytes, budget, cap_tm, cap_tn):
    # TN (lanes / MXU width): 256-512 is plenty; bigger TN buys nothing on
    # HBM re-reads. Shrink only if D is so large that Y alone blows the budget.
    tn_cap = cap_tn
    while tn_cap > 128 and 2 * tn_cap * D_pad * in_bytes > budget // 3:
        tn_cap = max(128, _round_down(tn_cap // 2, 128))
    TN = M if M <= tn_cap else tn_cap
    tn_vmem = max(_round_up(TN, 128), 128)

    # TM (sublanes): maximize within the double-buffered working set
    #   2*(TM*D_pad*in_bytes)  X     2*(TN*D_pad*in_bytes)  Y
    #   2*(TM*TN*4)            out   2*(TM*128*4)/2*(8*TN*4) xx/yy (layout pad)
    fixed = 2 * tn_vmem * D_pad * in_bytes + 2 * 8 * tn_vmem * 4
    per_tm = 2 * (D_pad * in_bytes + tn_vmem * 4 + 128 * 4)
    tm_cap = max(8, min(cap_tm, _round_down(max(budget - fixed, 0) // per_tm, 8)))
    TM = N if N <= tm_cap else tm_cap
    return TM, TN


def _eltwise_tiles(N, M, budget, cap_tm, cap_tn):
    # Pure read/exp/write pass: wide lane-dense blocks for unmasked stores.
    TN = M if M <= cap_tn else cap_tn
    tn_vmem = max(_round_up(TN, 128), 128)
    tm_cap = max(8, min(cap_tm, _round_down(budget // (16 * tn_vmem), 8)))
    TM = N if N <= tm_cap else tm_cap
    return TM, TN


# ---------------------------------------------------------------------------
# Wrapper
# ---------------------------------------------------------------------------

def rbf_forward(X, Y, sigma=None, *, bf16_matmul=None, tile_cap=None,
                median_exact_max=4 * 1024 * 1024, median_sample=1 << 20):
    """Pallas implementation of RBF.forward(X, Y)."""
    N, D = X.shape
    M, D2 = Y.shape
    assert D == D2
    f32 = jnp.float32
    X = X.astype(f32)
    Y = Y.astype(f32)

    # Zero-pad the feature/contraction dim to a lane-dense multiple of 128.
    D_pad = _round_up(D, 128)
    Xp = jnp.pad(X, ((0, 0), (0, D_pad - D))) if D_pad != D else X
    Yp = jnp.pad(Y, ((0, 0), (0, D_pad - D))) if D_pad != D else Y

    # Gram diagonals as exact-f32 row sums of squares (tiny O(N*D) glue).
    xx_diag = jnp.sum(Xp * Xp, axis=1, keepdims=True)        # (N, 1)
    yy_diag = jnp.sum(Yp * Yp, axis=1, keepdims=True).T      # (1, M)

    # Feed the MXU in bf16 for large D (f32 matmul is multi-pass on the MXU);
    # diagonals, accumulation and exp stay f32.
    if bf16_matmul is None:
        bf16_matmul = D >= 256
    if bf16_matmul:
        Xp = Xp.astype(jnp.bfloat16)
        Yp = Yp.astype(jnp.bfloat16)
    in_bytes = 2 if bf16_matmul else 4

    budget = _vmem_budget_bytes()
    tile_budget = int(budget * 0.85)
    cap_tm = 2048 if tile_cap is None else max(_round_up(tile_cap, 8), 8)
    cap_tn = 512 if tile_cap is None else max(_round_up(tile_cap, 128), 128)
    TM, TN = _matmul_tiles(N, M, D_pad, in_bytes, tile_budget, cap_tm, cap_tn)
    grid = (pl.cdiv(N, TM), pl.cdiv(M, TN))

    gamma_spec = pl.BlockSpec(memory_space=pltpu.SMEM)
    x_spec = pl.BlockSpec((TM, D_pad), lambda i, j: (i, 0))
    y_spec = pl.BlockSpec((TN, D_pad), lambda i, j: (j, 0))
    xx_spec = pl.BlockSpec((TM, 1), lambda i, j: (i, 0))
    yy_spec = pl.BlockSpec((1, TN), lambda i, j: (0, j))
    out_spec = pl.BlockSpec((TM, TN), lambda i, j: (i, j))

    cparams = pltpu.CompilerParams(
        dimension_semantics=("parallel", "parallel"),   # v7x: 2 TCs split tiles
        vmem_limit_bytes=budget)

    if sigma is not None:
        # --- fused fast path: no dnorm2 materialization in HBM ---
        s = jnp.asarray(sigma, f32)
        gamma_arr = jnp.reshape(1.0 / (1e-8 + 2.0 * s * s), (1,)).astype(f32)
        return pl.pallas_call(
            _rbf_fused_kernel,
            out_shape=jax.ShapeDtypeStruct((N, M), f32),
            grid=grid,
            in_specs=[gamma_spec, x_spec, y_spec, xx_spec, yy_spec],
            out_specs=out_spec,
            compiler_params=cparams,
        )(gamma_arr, Xp, Yp, xx_diag, yy_diag)

    # --- sigma=None: dnorm2 must be materialized for the median heuristic ---
    dnorm2 = pl.pallas_call(
        _dnorm2_kernel,
        out_shape=jax.ShapeDtypeStruct((N, M), f32),
        grid=grid,
        in_specs=[x_spec, y_spec, xx_spec, yy_spec],
        out_specs=out_spec,
        compiler_params=cparams,
    )(Xp, Yp, xx_diag, yy_diag)

    # TODO(synk): median (sort-based) has no clean Pallas equivalent; plain-JAX glue.
    # NOTE: like the torch reference, no clamping of dnorm2/h -- degenerate
    # (all-duplicate) inputs would give h<=0 and NaN sigma in both.
    if N * M <= median_exact_max:
        med = jnp.median(dnorm2)
    else:
        # Sampled median: the bandwidth heuristic does not need an exact median
        # and a full O(NM log NM) sort would dwarf the Pallas kernels.
        kr, kc = jax.random.split(jax.random.PRNGKey(0))
        rows = jax.random.randint(kr, (median_sample,), 0, N)
        cols = jax.random.randint(kc, (median_sample,), 0, M)
        med = jnp.median(dnorm2[rows, cols])
    h = med / (2.0 * jnp.log(jnp.float32(N + 1)))
    sigma_val = jnp.sqrt(h)
    gamma_arr = jnp.reshape(1.0 / (1e-8 + 2.0 * sigma_val ** 2), (1,)).astype(f32)

    # Elementwise exp pass: lane-dense tiles, output aliased in place over
    # dnorm2 (halves peak HBM footprint; pure read/exp/write at HBM roofline).
    cap_bm = 1024 if tile_cap is None else max(_round_up(tile_cap, 8), 8)
    cap_bn = 2048 if tile_cap is None else max(_round_up(tile_cap, 128), 128)
    TBM, TBN = _eltwise_tiles(N, M, tile_budget, cap_bm, cap_bn)
    e_spec = pl.BlockSpec((TBM, TBN), lambda i, j: (i, j))
    return pl.pallas_call(
        _exp_kernel,
        out_shape=jax.ShapeDtypeStruct((N, M), f32),
        grid=(pl.cdiv(N, TBM), pl.cdiv(M, TBN)),
        in_specs=[gamma_spec, e_spec],
        out_specs=e_spec,
        compiler_params=cparams,
        input_output_aliases={1: 0},
    )(gamma_arr, dnorm2)


# ---------------------------------------------------------------------------
# Pure-JAX reference mirroring the torch module
# ---------------------------------------------------------------------------

def rbf_reference(X, Y, sigma=None):
    X = X.astype(jnp.float32)
    Y = Y.astype(jnp.float32)
    XX = X @ X.T
    XY = X @ Y.T
    YY = Y @ Y.T
    dnorm2 = -2.0 * XY + jnp.diag(XX)[:, None] + jnp.diag(YY)[None, :]
    if sigma is None:
        h = jnp.median(dnorm2) / (2.0 * jnp.log(jnp.float32(X.shape[0] + 1)))
        sigma = jnp.sqrt(h)
    gamma = 1.0 / (1e-8 + 2.0 * jnp.asarray(sigma, jnp.float32) ** 2)
    return jnp.exp(-gamma * dnorm2)


if __name__ == "__main__":
    key = jax.random.PRNGKey(0)
    kx, ky, kx2, ky2, kx3, ky3 = jax.random.split(key, 6)

    # 1) default module config: sigma=None (median bandwidth heuristic)
    N, M, D = 8, 8, 32
    X = jax.random.normal(kx, (N, D), dtype=jnp.float32)
    Y = jax.random.normal(ky, (M, D), dtype=jnp.float32)
    K = jax.block_until_ready(rbf_forward(X, Y, sigma=None))
    K_ref = rbf_reference(X, Y, sigma=None)
    assert K.shape == (N, M)
    assert jnp.allclose(K, K_ref, rtol=1e-4, atol=1e-5)

    # 2) fused fast path with a fixed sigma
    K2 = jax.block_until_ready(rbf_forward(X, Y, sigma=0.5))
    K2_ref = rbf_reference(X, Y, sigma=0.5)
    assert jnp.allclose(K2, K2_ref, rtol=1e-4, atol=1e-5)

    # 3) non-aligned shapes forcing a multi-tile grid with partial edge blocks
    N3, M3, D3 = 136, 200, 48
    X3 = jax.random.normal(kx2, (N3, D3), dtype=jnp.float32)
    Y3 = jax.random.normal(ky2, (M3, D3), dtype=jnp.float32)
    K3 = jax.block_until_ready(rbf_forward(X3, Y3, sigma=None, tile_cap=128))
    K3_ref = rbf_reference(X3, Y3, sigma=None)
    assert K3.shape == (N3, M3)
    assert jnp.allclose(K3, K3_ref, rtol=1e-4, atol=1e-4)

    # 4) large-D path feeding the MXU in bf16 (f32 accumulation / f32 diags)
    N4, M4, D4 = 96, 160, 256
    X4 = jax.random.normal(kx3, (N4, D4), dtype=jnp.float32)
    Y4 = jax.random.normal(ky3, (M4, D4), dtype=jnp.float32)
    K4 = jax.block_until_ready(rbf_forward(X4, Y4, sigma=None))
    K4_ref = rbf_reference(X4, Y4, sigma=None)
    assert K4.shape == (N4, M4)
    assert jnp.allclose(K4, K4_ref, rtol=5e-2, atol=5e-2)

    print("KERNEL_OK")
</pallas_src>

<mosaic_0001>
module attributes {stable_mosaic.version = 11 : i64} {
  func.func @_dnorm2_kernel(%arg0: i32, %arg1: i32, %arg2: memref<8x128xf32, #tpu.memory_space<vmem>>, %arg3: memref<8x128xf32, #tpu.memory_space<vmem>>, %arg4: memref<8x1xf32, #tpu.memory_space<vmem>>, %arg5: memref<1x8xf32, #tpu.memory_space<vmem>>, %arg6: memref<8x8xf32, #tpu.memory_space<vmem>>) attributes {dimension_semantics = [#tpu.dimension_semantics<parallel>, #tpu.dimension_semantics<parallel>], iteration_bounds = array<i64: 1, 1>, scalar_prefetch = 0 : i64, scratch_operands = 0 : i64, tpu.core_type = #tpu.core_type<tc>, window_params = [{transform_indices = @transform_0, window_bounds = array<i64: 8, 128>}, {transform_indices = @transform_1, window_bounds = array<i64: 8, 128>}, {transform_indices = @transform_2, window_bounds = array<i64: 8, 1>}, {transform_indices = @transform_3, window_bounds = array<i64: 1, 8>}, {transform_indices = @transform_4, window_bounds = array<i64: 8, 8>}]} {
    %c0 = arith.constant 0 : index
    %c0_0 = arith.constant 0 : index
    %0 = vector.load %arg2[%c0, %c0_0] : memref<8x128xf32, #tpu.memory_space<vmem>>, vector<8x128xf32>
    %c0_1 = arith.constant 0 : index
    %c0_2 = arith.constant 0 : index
    %1 = vector.load %arg3[%c0_1, %c0_2] : memref<8x128xf32, #tpu.memory_space<vmem>>, vector<8x128xf32>
    %cst = arith.constant dense<0.000000e+00> : vector<8x8xf32>
    %2 = tpu.matmul %0, %1, %cst {dimension_numbers = #tpu.dot_dimension_numbers<[1], [1], [0], [0], [0, 0, 1, 0], [], []>} : vector<8x128xf32>, vector<8x128xf32>, vector<8x8xf32> -> vector<8x8xf32>
    %cst_3 = arith.constant -2.000000e+00 : f32
    %3 = vector.broadcast %cst_3 : f32 to vector<8x8xf32>
    %4 = arith.mulf %3, %2 : vector<8x8xf32>
    %c0_4 = arith.constant 0 : index
    %c0_5 = arith.constant 0 : index
    %5 = vector.load %arg4[%c0_4, %c0_5] : memref<8x1xf32, #tpu.memory_space<vmem>>, vector<8x1xf32>
    %6 = vector.broadcast %5 : vector<8x1xf32> to vector<8x8xf32>
    %7 = arith.addf %4, %6 : vector<8x8xf32>
    %c0_6 = arith.constant 0 : index
    %c0_7 = arith.constant 0 : index
    %8 = vector.load %arg5[%c0_6, %c0_7] : memref<1x8xf32, #tpu.memory_space<vmem>>, vector<1x8xf32>
    %9 = vector.broadcast %8 : vector<1x8xf32> to vector<8x8xf32>
    %10 = arith.addf %7, %9 : vector<8x8xf32>
    %c0_8 = arith.constant 0 : index
    %c0_9 = arith.constant 0 : index
    %11 = vector.load %arg6[%c0_8, %c0_9] : memref<8x8xf32, #tpu.memory_space<vmem>>, vector<8x8xf32>
    tpu.vector_store %arg6[%c0_8, %c0_9], %10 {strides = array<i32>} : memref<8x8xf32, #tpu.memory_space<vmem>>, vector<8x8xf32>,
    return
  }
  func.func @transform_0(%arg0: i32, %arg1: i32) -> (i32, i32) {
    %c0_i32 = arith.constant 0 : i32
    %c0_i32_0 = arith.constant 0 : i32
    return %arg0, %c0_i32 : i32, i32
  }
  func.func @transform_1(%arg0: i32, %arg1: i32) -> (i32, i32) {
    %c0_i32 = arith.constant 0 : i32
    %c0_i32_0 = arith.constant 0 : i32
    return %arg1, %c0_i32 : i32, i32
  }
  func.func @transform_2(%arg0: i32, %arg1: i32) -> (i32, i32) {
    %c0_i32 = arith.constant 0 : i32
    %c0_i32_0 = arith.constant 0 : i32
    return %arg0, %c0_i32 : i32, i32
  }
  func.func @transform_3(%arg0: i32, %arg1: i32) -> (i32, i32) {
    %c0_i32 = arith.constant 0 : i32
    %c0_i32_0 = arith.constant 0 : i32
    return %c0_i32, %arg1 : i32, i32
  }
  func.func @transform_4(%arg0: i32, %arg1: i32) -> (i32, i32) {
    %c0_i32 = arith.constant 0 : i32
    return %arg0, %arg1 : i32, i32
  }
}

</mosaic_0001>

<llo_original>
// kernel: tpu_custom_call.1
$region0: #{tpu_custom_call.1}
  #allocation0 [shape = 'u32[]', space=smem, size = 0x4, offset = 0x4, fixed_abs, tag = 'smem constant byte address 0x4 - core index']
  #allocation1 [shape = 'u32[144,128]{1,0:T(1,128)}', space=vmem, size = 0x12000, scoped, tag = 'internal scratch']
  %s0 = inlined_call_operand.vmem [shape: f32[8,128], index: 0, kind: input, shape index: {}]
  %s1 = inlined_call_operand.hbm [shape: f32[8,128], index: 1, kind: input, shape index: {}]
  %s2 = inlined_call_operand.vmem [shape: f32[8,1], index: 2, kind: input, shape index: {}]
  %s3 = inlined_call_operand.vmem [shape: f32[1,8], index: 3, kind: input, shape index: {}]
  %s4 = inlined_call_operand.hbm [shape: f32[8,8], index: 4, kind: output, shape index: {}]
  %s5 = sld [smem:[#allocation0]]
  $region30: #{tpu_custom_call.1} parent=0
    _
  %s7 = ssub.s32 1, %s5
  %s8 = scalar_select 0, %s7, %s5
  $region1: #{tpu_custom_call.1} parent=0
    #allocation2 [shape = 'u8[4096]{0}', space=vmem, size = 0x1000, scoped, tag = 'input window, operand 1, single buffered']
    #allocation3 [shape = 's32[1]{0}', space=sflag, size = 0x4, scoped, tag = 'scoped memory for tpu_custom_call.1']
    #allocation4 [shape = 's32[1]{0}', space=sflag, size = 0x4, scoped, tag = 'scoped memory for tpu_custom_call.1']
    #allocation5 [shape = 'u8[4096]{0}', space=vmem, size = 0x1000, scoped, tag = 'output window, operand 0, single buffered']
    %9 = vsyncpa [#allocation3], 0
    %10 = vsyncpa [#allocation4], 0
    // Predicated region
    $region2: #{tpu_custom_call.1} parent=1 // pred_check
      _
    $region3: #{tpu_custom_call.1} parent=1 // pred_check_branch
      %12 = sbr.rel (0) target = $region5
    $region4: #{tpu_custom_call.1} parent=1 // pred_region
      _
    $region5: #{tpu_custom_call.1} parent=1 // pred_fallthru
      _
    // Predicated region
    $region6: #{tpu_custom_call.1} parent=1 // pred_check
      _
    $region7: #{tpu_custom_call.1} parent=1 // pred_check_branch
      %14 = sbr.rel (0) target = $region9
    $region8: #{tpu_custom_call.1} parent=1 // pred_region
      %s16 = ssub.s32 128, 128
      %17 = vsyncadd [#allocation3], %s16
      %s19 = sshll.u32 [#allocation2], 4
      %s20 = int_to_ptr.vmem [resolvable:$true] %s19
      %22 = dma.hbm_to_vmem [thread:$0]  %s1, 128, %s20, [#allocation3]
    $region9: #{tpu_custom_call.1} parent=1 // pred_fallthru
      _
    // Predicated region
    $region10: #{tpu_custom_call.1} parent=1 // pred_check
      _
    $region11: #{tpu_custom_call.1} parent=1 // pred_check_branch
      %24 = sbr.rel (0) target = $region13
    $region12: #{tpu_custom_call.1} parent=1 // pred_region
      _
    $region13: #{tpu_custom_call.1} parent=1 // pred_fallthru
      _
    // Predicated region
    $region14: #{tpu_custom_call.1} parent=1 // pred_check
      _
    $region15: #{tpu_custom_call.1} parent=1 // pred_check_branch
      %26 = sbr.rel (0) target = $region17
    $region16: #{tpu_custom_call.1} parent=1 // pred_region
      _
    $region17: #{tpu_custom_call.1} parent=1 // pred_fallthru
      _
    // Predicated region
    $region18: #{tpu_custom_call.1} parent=1 // pred_check
      _
    $region19: #{tpu_custom_call.1} parent=1 // pred_check_branch
      %28 = sbr.rel (0) target = $region21
    $region20: #{tpu_custom_call.1} parent=1 // pred_region
      %29 = dma.done [#allocation3], 128
    $region21: #{tpu_custom_call.1} parent=1 // pred_fallthru
      _
    %v30 = vld [vmem:[%s0] sm:$0xff]
    %v31 = vld [vmem:[#allocation2] sm:$0xff]
    %32 = vmatprep.subr.mxu0 0.0
    %33 = vmatpush1.xpose.msra.mxu0 0.0
    %34 = vmatprep.subr.mxu0 0.0
    %35 = vmatpush1.xpose.msra.mxu0 0.0
    %36 = vmatprep.subr.mxu0 0.0
    %37 = vmatpush1.xpose.msra.mxu0 0.0
    %38 = vmatprep.subr.mxu0 0.0
    %39 = vmatpush1.xpose.msra.mxu0 0.0
    %40 = vmatprep.subr.mxu0 0.0
    %41 = vmatpush1.xpose.msra.mxu0 0.0
    %42 = vmatprep.subr.mxu0 0.0
    %43 = vmatpush1.xpose.msra.mxu0 0.0
    %44 = vmatprep.subr.mxu0 0.0
    %45 = vmatpush1.xpose.msra.mxu0 0.0
    %46 = vmatprep.subr.mxu0 0.0
    %47 = vmatpush1.xpose.msra.mxu0 0.0
    %48 = vmatprep.subr.mxu0 0.0
    %49 = vmatpush1.xpose.msra.mxu0 0.0
    %50 = vmatprep.subr.mxu0 0.0
    %51 = vmatpush1.xpose.msra.mxu0 0.0
    %52 = vmatprep.subr.mxu0 0.0
    %53 = vmatpush1.xpose.msra.mxu0 0.0
    %54 = vmatprep.subr.mxu0 0.0
    %55 = vmatpush1.xpose.msra.mxu0 0.0
    %56 = vmatprep.subr.mxu0 0.0
    %57 = vmatpush1.xpose.msra.mxu0 0.0
    %58 = vmatprep.subr.mxu0 0.0
    %59 = vmatpush1.xpose.msra.mxu0 0.0
    %60 = vmatprep.subr.mxu0 0.0
    %61 = vmatpush1.xpose.msra.mxu0 0.0
    %62 = vmatprep.subr.mxu0 0.0
    %63 = vmatpush1.xpose.msra.mxu0 %v31
    %64 = vmatprep.subr.mxu0 0.0
    %65 = vmatpush2.xpose.msra.mxu0 0.0
    %66 = vmatprep.subr.mxu0 0.0
    %67 = vmatpush2.xpose.msra.mxu0 0.0
    %68 = vmatprep.subr.mxu0 0.0
    %69 = vmatpush2.xpose.msra.mxu0 0.0
    %70 = vmatprep.subr.mxu0 0.0
    %71 = vmatpush2.xpose.msra.mxu0 0.0
    %72 = vmatprep.subr.mxu0 0.0
    %73 = vmatpush2.xpose.msra.mxu0 0.0
    %74 = vmatprep.subr.mxu0 0.0
    %75 = vmatpush2.xpose.msra.mxu0 0.0
    %76 = vmatprep.subr.mxu0 0.0
    %77 = vmatpush2.xpose.msra.mxu0 0.0
    %78 = vmatprep.subr.mxu0 0.0
    %79 = vmatpush2.xpose.msra.mxu0 0.0
    %80 = vmatprep.subr.mxu0 0.0
    %81 = vmatpush2.xpose.msra.mxu0 0.0
    %82 = vmatprep.subr.mxu0 0.0
    %83 = vmatpush2.xpose.msra.mxu0 0.0
    %84 = vmatprep.subr.mxu0 0.0
    %85 = vmatpush2.xpose.msra.mxu0 0.0
    %86 = vmatprep.subr.mxu0 0.0
    %87 = vmatpush2.xpose.msra.mxu0 0.0
    %88 = vmatprep.subr.mxu0 0.0
    %89 = vmatpush2.xpose.msra.mxu0 0.0
    %90 = vmatprep.subr.mxu0 0.0
    %91 = vmatpush2.xpose.msra.mxu0 0.0
    %92 = vmatprep.subr.mxu0 0.0
    %93 = vmatpush2.xpose.msra.mxu0 0.0
    %94 = vmatprep.subr.mxu0 0.0
    %95 = vmatpush2.xpose.msra.mxu0 0.0
    %96 = vmatprep.mubr.f32.mxu0 0.0
    %97 = vmatmul.mubr.f32.gmra.mxu0 %v30
    %v98 = vpop.f32.mrf.mxu0
    %v99 = vadd.f32 0.0, %v98
    %v100 = vpop.f32.mrf.mxu0
    %101 = vdwg.mxu0
    %v102 = vmul.f32 %v99, -2.0
    %v103 = vld [vmem:[%s2] sm:$0xff]
    %105 = vset.pattern.permute.xlu0 0
    %106 = vperm.xlu0 %105, %v103
    %v107 = vpop.permute.xlu0 %106
    %v109 = vadd.f32 %v102, %v107
    %v110 = vld [vmem:[%s3] sm:$0x1]
    %v112 = vlaneseq
    %v113 = vshrl.u32 %v112, 7
    %v114 = vsub.s32 0, %v113
    %v115 = vrot.slane %v110, %v114
    %v117 = vadd.f32 %v109, %v115
    %vm118 = vcmask 64512
    %119 = vst.msk [vmem:[#allocation5] sm:$0xff] %vm118, %v117
    // Predicated region
    $region22: #{tpu_custom_call.1} parent=1 // pred_check
      _
    $region23: #{tpu_custom_call.1} parent=1 // pred_check_branch
      %121 = sbr.rel (0) target = $region25
    $region24: #{tpu_custom_call.1} parent=1 // pred_region
      %s123 = ssub.s32 128, 128
      %124 = vsyncadd [#allocation4], %s123
      %s126 = sshll.u32 [#allocation5], 4
      %s127 = int_to_ptr.vmem [resolvable:$true] %s126
      %129 = dma.vmem_to_hbm [thread:$0]  %s127, 128, %s4, [#allocation4]
    $region25: #{tpu_custom_call.1} parent=1 // pred_fallthru
      _
    // Predicated region
    $region26: #{tpu_custom_call.1} parent=1 // pred_check
      _
    $region27: #{tpu_custom_call.1} parent=1 // pred_check_branch
      %131 = sbr.rel (0) target = $region29
    $region28: #{tpu_custom_call.1} parent=1 // pred_region
      %132 = dma.done [#allocation4], 128
    $region29: #{tpu_custom_call.1} parent=1 // pred_fallthru
      _
    %133 = vsyncpa [#allocation3], 1
    %134 = vsyncpa [#allocation4], 1

</llo_original>
